<compile_context>
chip_gen: v7x
topology: tpu7x:2x2x1
jax: 0.10.0
libtpu: 0.0.40
codegen_flags: <defaults>
</compile_context>

<pallas_src>
import functools

import jax
import jax.numpy as jnp
from jax import lax
from jax.experimental import pallas as pl
from jax.experimental.pallas import tpu as pltpu


_MAX_BLOCK_ROWS = 1024


def _rmsnorm_kernel(x_ref, w_ref, o_ref, *, eps, exact):
    # x_ref: (TM, H) hidden-state block (input dtype)
    # w_ref: (1, H)  weight row, resident in VMEM across the whole grid
    # o_ref: (TM, H) output block
    x = x_ref[...].astype(jnp.float32)
    variance = jnp.mean(x * x, axis=-1, keepdims=True)       # XLU lane reduce
    x_norm = x * lax.rsqrt(variance + eps)                    # EUP rsqrt
    if exact:
        # Torch-exact: cast normalized activations back to the input dtype,
        # then multiply by the weight (result dtype follows promotion).
        o_ref[...] = (w_ref[...] * x_norm.astype(x_ref.dtype)).astype(o_ref.dtype)
    else:
        # Fast path (requested output dtype narrower than torch promotion):
        # stay in f32 and round once -> no down/up-cast ping-pong and fewer
        # full-tile f32 temporaries in VMEM.
        o_ref[...] = (x_norm * w_ref[...].astype(jnp.float32)).astype(o_ref.dtype)


def _vmem_budget():
    """Return (vmem_limit_bytes, pipeline_budget_bytes) for this chip."""
    phys = None
    try:
        phys = getattr(pltpu.get_tpu_info(), "vmem_capacity_bytes", None)
    except Exception:
        phys = None
    if phys is None:
        phys = 64 * 1024 * 1024          # conservative: v7x per-core VMEM
    if phys >= 128 * 1024 * 1024:
        # v5e / v6e: 128 MiB physical VMEM -> raise scoped limit, bigger tiles.
        return 96 * 1024 * 1024, 64 * 1024 * 1024
    # v7x: 64 MiB physical / 32 MiB scoped.  20 MiB of double-buffered I/O
    # plus the (now accounted-for) f32 intermediates fits with headroom.
    return 32 * 1024 * 1024, 20 * 1024 * 1024


def _pick_block_rows(rows, hidden, in_dtype, out_dtype, pipeline_budget):
    in_bytes = jnp.dtype(in_dtype).itemsize
    out_bytes = jnp.dtype(out_dtype).itemsize
    # Native sublane tile of the narrowest streamed dtype: (32 / itemsize, 128).
    sublane = max(8, 32 // min(in_bytes, out_bytes))
    if rows <= sublane:
        return rows                      # full-extent single block, nothing to split
    # Per-row VMEM per grid step:
    #   double-buffered input + output blocks
    #   + ~2 single-buffered f32 (TM, H) in-kernel intermediates (the upcast x
    #     and x_norm) that Mosaic may materialize.
    per_row = (2 * (in_bytes + out_bytes) + 2 * 4) * hidden
    tm = pipeline_budget // per_row
    tm = max(sublane, (tm // sublane) * sublane)
    tm = min(tm, _MAX_BLOCK_ROWS)
    # Megacore: keep >= 2 roughly balanced grid steps so both v7x TensorCores
    # get work; near-free on single-TC v5e/v6e.
    half = max(sublane, (((rows + 1) // 2) // sublane) * sublane)
    return min(tm, half)


def mistral_rmsnorm(hidden_states, weight, eps=1e-6, *, out_dtype=None,
                    exact_promotion=False, block_rows=None):
    """Pallas RMSNorm over the last axis of `hidden_states`.

    hidden_states: (..., hidden); weight: (hidden,).
    Default (fast path): output dtype == hidden_states.dtype, halving HBM
    write traffic when the weight is wider (e.g. bf16 activations, f32 weight).
    Pass exact_promotion=True (or an explicit out_dtype) for the torch module's
    exact result dtype (weight.dtype x input dtype promotion).
    """
    orig_shape = hidden_states.shape
    hidden = orig_shape[-1]
    rows = 1
    for d in orig_shape[:-1]:
        rows *= d

    x2d = hidden_states.reshape(rows, hidden)
    w2d = weight.reshape(1, hidden)

    promoted = jnp.promote_types(weight.dtype, hidden_states.dtype)
    if exact_promotion:
        out_dtype = promoted
    elif out_dtype is None:
        out_dtype = hidden_states.dtype
    out_dtype = jnp.dtype(out_dtype)
    # Use the torch-exact cast order whenever the output dtype equals the
    # torch-promoted dtype; otherwise take the fused single-rounding f32 path.
    exact = out_dtype == jnp.dtype(promoted)

    vmem_limit, pipeline_budget = _vmem_budget()
    if block_rows is None:
        tm = _pick_block_rows(rows, hidden, x2d.dtype, out_dtype, pipeline_budget)
    else:
        tm = block_rows
    tm = min(tm, rows)
    grid = (pl.cdiv(rows, tm),)

    out = pl.pallas_call(
        functools.partial(_rmsnorm_kernel, eps=eps, exact=exact),
        out_shape=jax.ShapeDtypeStruct((rows, hidden), out_dtype),
        grid_spec=pltpu.PrefetchScalarGridSpec(
            num_scalar_prefetch=0,
            grid=grid,
            in_specs=[
                # TODO(synk): if DMA issue latency peeks through at small TM on
                # v7x, sweep pipeline_mode=pl.Buffered(3) on this spec.
                pl.BlockSpec((tm, hidden), lambda i: (i, 0)),
                # Constant block index -> weight fetched once, resident in VMEM
                # for all grid steps.
                pl.BlockSpec((1, hidden), lambda i: (0, 0)),
            ],
            out_specs=pl.BlockSpec((tm, hidden), lambda i: (i, 0)),
        ),
        compiler_params=pltpu.CompilerParams(
            # TODO(synk): verify "parallel" shards the row axis across both v7x
            # TensorCores; switch to pltpu.CORE_PARALLEL if it does not.
            dimension_semantics=("parallel",),
            vmem_limit_bytes=vmem_limit,
        ),
    )(x2d, w2d)

    return out.reshape(orig_shape)


def _reference_rmsnorm(hidden_states, weight, eps=1e-6):
    input_dtype = hidden_states.dtype
    x = hidden_states.astype(jnp.float32)
    variance = jnp.mean(x * x, axis=-1, keepdims=True)
    x = x * lax.rsqrt(variance + eps)
    return weight * x.astype(input_dtype)


if __name__ == "__main__":
    key = jax.random.PRNGKey(0)
    k1, k2 = jax.random.split(key)
    eps = 1e-6

    # Case 1: typical Mistral setup — bf16 activations, bf16 weight
    # (exact path; output dtype equals the torch result dtype).
    batch, seq, hidden = 2, 8, 128
    x = jax.random.normal(k1, (batch, seq, hidden), dtype=jnp.float32).astype(
        jnp.bfloat16
    )
    w_bf16 = (1.0 + 0.01 * jnp.arange(hidden, dtype=jnp.float32)).astype(jnp.bfloat16)
    out1 = jax.block_until_ready(mistral_rmsnorm(x, w_bf16, eps))
    ref1 = _reference_rmsnorm(x, w_bf16, eps)
    assert out1.shape == ref1.shape and out1.dtype == ref1.dtype, (out1.shape, out1.dtype)
    assert jnp.allclose(out1.astype(jnp.float32), ref1.astype(jnp.float32),
                        atol=2e-2, rtol=2e-2), "case 1 mismatch"

    # Case 2: bf16 activations, f32 weight, torch-exact promotion (f32 output).
    w_f32 = jnp.ones((hidden,), dtype=jnp.float32)
    out2 = jax.block_until_ready(mistral_rmsnorm(x, w_f32, eps, exact_promotion=True))
    ref2 = _reference_rmsnorm(x, w_f32, eps)
    assert out2.dtype == ref2.dtype == jnp.float32, (out2.dtype, ref2.dtype)
    assert jnp.allclose(out2, ref2, atol=1e-2, rtol=1e-2), "case 2 mismatch"

    # Case 3: same inputs, default fast path -> bf16 output, same values,
    # one third of the HBM write traffic.
    out3 = jax.block_until_ready(mistral_rmsnorm(x, w_f32, eps))
    assert out3.dtype == jnp.bfloat16, out3.dtype
    assert jnp.allclose(out3.astype(jnp.float32), ref2, atol=2e-2, rtol=2e-2), \
        "case 3 mismatch"

    # Case 4: f32 activations, rows=21 -> auto tile of 8 rows, 3 grid steps
    # with a ragged last block; exercises the resident-weight reuse and the
    # megacore-friendly >=2-step grid split.
    x4 = jax.random.normal(k2, (3, 7, 256), dtype=jnp.float32)
    w4 = 1.0 + 0.01 * jnp.arange(256, dtype=jnp.float32)
    out4 = jax.block_until_ready(mistral_rmsnorm(x4, w4, eps))
    ref4 = _reference_rmsnorm(x4, w4, eps)
    assert out4.shape == ref4.shape and out4.dtype == ref4.dtype
    assert jnp.allclose(out4, ref4, atol=1e-5, rtol=1e-5), "case 4 mismatch"

    print("KERNEL_OK")
</pallas_src>

<mosaic_0001>
module attributes {stable_mosaic.version = 11 : i64} {
  func.func @_rmsnorm_kernel(%arg0: i32, %arg1: memref<16x128xbf16, #tpu.memory_space<vmem>>, %arg2: memref<1x128xbf16, #tpu.memory_space<vmem>>, %arg3: memref<16x128xbf16, #tpu.memory_space<vmem>>) attributes {dimension_semantics = [#tpu.dimension_semantics<parallel>], iteration_bounds = array<i64: 1>, scalar_prefetch = 0 : i64, scratch_operands = 0 : i64, tpu.core_type = #tpu.core_type<tc>, window_params = [{transform_indices = @transform_0, window_bounds = array<i64: 16, 128>}, {pipeline_mode = #tpu.pipeline_mode<synchronous>, transform_indices = @transform_1, window_bounds = array<i64: 1, 128>}, {transform_indices = @transform_2, window_bounds = array<i64: 16, 128>}]} {
    %c0 = arith.constant 0 : index
    %c0_0 = arith.constant 0 : index
    %0 = vector.load %arg1[%c0, %c0_0] : memref<16x128xbf16, #tpu.memory_space<vmem>>, vector<16x128xbf16>
    %1 = arith.extf %0 : vector<16x128xbf16> to vector<16x128xf32>
    %2 = arith.mulf %1, %1 : vector<16x128xf32>
    %cst = arith.constant dense<0.000000e+00> : vector<16xf32>
    %3 = vector.multi_reduction <add>, %2, %cst [1] : vector<16x128xf32> to vector<16xf32>
    %4 = vector.shape_cast %3 : vector<16xf32> to vector<16x1xf32>
    %cst_1 = arith.constant 1.280000e+02 : f32
    %5 = vector.broadcast %cst_1 : f32 to vector<16x1xf32>
    %6 = arith.divf %4, %5 : vector<16x1xf32>
    %cst_2 = arith.constant 9.99999997E-7 : f32
    %7 = vector.broadcast %cst_2 : f32 to vector<16x1xf32>
    %8 = arith.addf %6, %7 : vector<16x1xf32>
    %9 = math.rsqrt %8 : vector<16x1xf32>
    %10 = vector.broadcast %9 : vector<16x1xf32> to vector<16x128xf32>
    %11 = arith.mulf %1, %10 : vector<16x128xf32>
    %c0_3 = arith.constant 0 : index
    %c0_4 = arith.constant 0 : index
    %12 = vector.load %arg2[%c0_3, %c0_4] : memref<1x128xbf16, #tpu.memory_space<vmem>>, vector<1x128xbf16>
    %13 = arith.truncf %11 : vector<16x128xf32> to vector<16x128xbf16>
    %14 = vector.broadcast %12 : vector<1x128xbf16> to vector<16x128xbf16>
    %15 = arith.mulf %14, %13 : vector<16x128xbf16>
    %c0_5 = arith.constant 0 : index
    %c0_6 = arith.constant 0 : index
    %16 = vector.load %arg3[%c0_5, %c0_6] : memref<16x128xbf16, #tpu.memory_space<vmem>>, vector<16x128xbf16>
    tpu.vector_store %arg3[%c0_5, %c0_6], %15 {strides = array<i32>} : memref<16x128xbf16, #tpu.memory_space<vmem>>, vector<16x128xbf16>,
    return
  }
  func.func @transform_0(%arg0: i32) -> (i32, i32) {
    %c0_i32 = arith.constant 0 : i32
    %c0_i32_0 = arith.constant 0 : i32
    return %arg0, %c0_i32 : i32, i32
  }
  func.func @transform_1(%arg0: i32) -> (i32, i32) {
    %c0_i32 = arith.constant 0 : i32
    %c0_i32_0 = arith.constant 0 : i32
    %c0_i32_1 = arith.constant 0 : i32
    return %c0_i32, %c0_i32_0 : i32, i32
  }
  func.func @transform_2(%arg0: i32) -> (i32, i32) {
    %c0_i32 = arith.constant 0 : i32
    %c0_i32_0 = arith.constant 0 : i32
    return %arg0, %c0_i32 : i32, i32
  }
}

</mosaic_0001>

<llo_original>
// kernel: tpu_custom_call.1
$region0: #{tpu_custom_call.1}
  #allocation0 [shape = 'u32[]', space=smem, size = 0x4, offset = 0x4, fixed_abs, tag = 'smem constant byte address 0x4 - core index']
  #allocation1 [shape = 'u32[144,128]{1,0:T(1,128)}', space=vmem, size = 0x12000, scoped, tag = 'internal scratch']
  %s0 = inlined_call_operand.hbm [shape: bf16[16,128], index: 0, kind: input, shape index: {}]
  %s1 = inlined_call_operand.vmem [shape: bf16[1,128], index: 1, kind: input, shape index: {}]
  %s2 = inlined_call_operand.hbm [shape: bf16[16,128], index: 2, kind: output, shape index: {}]
  %s3 = sld [smem:[#allocation0]]
  $region22: #{tpu_custom_call.1} parent=0
    _
  %s5 = ssub.s32 1, %s3
  %s6 = scalar_select 0, %s5, %s3
  $region1: #{tpu_custom_call.1} parent=0
    #allocation2 [shape = 'u8[4096]{0}', space=vmem, size = 0x1000, scoped, tag = 'input window, operand 0, single buffered']
    #allocation3 [shape = 's32[1]{0}', space=sflag, size = 0x4, scoped, tag = 'scoped memory for tpu_custom_call.1']
    #allocation4 [shape = 's32[1]{0}', space=sflag, size = 0x4, scoped, tag = 'scoped memory for tpu_custom_call.1']
    #allocation5 [shape = 'u8[4096]{0}', space=vmem, size = 0x1000, scoped, tag = 'output window, operand 0, single buffered']
    %7 = vsyncpa [#allocation3], 0
    %8 = vsyncpa [#allocation4], 0
    // Predicated region
    $region2: #{tpu_custom_call.1} parent=1 // pred_check
      _
    $region3: #{tpu_custom_call.1} parent=1 // pred_check_branch
      %10 = sbr.rel (0) target = $region5
    $region4: #{tpu_custom_call.1} parent=1 // pred_region
      %s12 = ssub.s32 128, 128
      %13 = vsyncadd [#allocation3], %s12
      %s14 = sshll.u32 [#allocation2], 4
      %s15 = int_to_ptr.vmem [resolvable:$true] %s14
      %20 = dma.hbm_to_vmem [thread:$0]  %s0, 128, %s15, [#allocation3], 64, 64, 4
    $region5: #{tpu_custom_call.1} parent=1 // pred_fallthru
      _
    // Predicated region
    $region6: #{tpu_custom_call.1} parent=1 // pred_check
      _
    $region7: #{tpu_custom_call.1} parent=1 // pred_check_branch
      %22 = sbr.rel (0) target = $region9
    $region8: #{tpu_custom_call.1} parent=1 // pred_region
      _
    $region9: #{tpu_custom_call.1} parent=1 // pred_fallthru
      _
    // Predicated region
    $region10: #{tpu_custom_call.1} parent=1 // pred_check
      _
    $region11: #{tpu_custom_call.1} parent=1 // pred_check_branch
      %24 = sbr.rel (0) target = $region13
    $region12: #{tpu_custom_call.1} parent=1 // pred_region
      %25 = dma.done [#allocation3], 128
    $region13: #{tpu_custom_call.1} parent=1 // pred_fallthru
      _
    %v26 = vld [vmem:[#allocation2] sm:$0xf]
    %v27 = vld [vmem:[#allocation2 + $0x4] sm:$0xf]
    %v28 = vunpack.c.l.bf16 %v26
    %v29 = vunpack.c.l.bf16 %v27
    %v30 = vmul.f32 %v28, %v28
    %v31 = vmul.f32 %v29, %v29
    %32 = vadd.xlane.f32.xlu0 %v30
    %v33 = vpop.xlane.xlu0 %32
    %34 = vadd.xlane.f32.xlu0 %v31
    %v35 = vpop.xlane.xlu0 %34
    %v36 = vrcp.pop 128.0
    %v37 = vmul.f32 %v33, %v36
    %v38 = vmul.f32 %v35, %v36
    %v39 = vadd.f32 %v37, 1e-06
    %v40 = vadd.f32 %v38, 1e-06
    %v41 = vrsqrt.pop %v39
    %v42 = vrsqrt.pop %v40
    %v43 = vmul.f32 %v28, %v41
    %v44 = vmul.f32 %v29, %v42
    %v45 = vld [vmem:[%s1] sm:$0x1]
    %v46 = vpack.c.bf16 %v44, %v43
    %v48 = vpack.i.b16 %v45, %v45
    %v50 = vlaneseq
    %v51 = vshrl.u32 %v50, 7
    %v52 = vsub.s32 0, %v51
    %v53 = vrot.slane %v48, %v52
    %v54 = vmul.bf16 %v53, %v46
    %v56 = vunpack.c.l.b16 %v54
    %v57 = vunpack.c.h.b16 %v54
    %v58 = vpack.c.b16 %v56, %v56
    %v59 = vpack.c.b16 %v57, %v57
    %62 = vst [vmem:[#allocation5] sm:$0xf] %v58
    %63 = vst [vmem:[#allocation5 + $0x4] sm:$0xf] %v59
    // Predicated region
    $region14: #{tpu_custom_call.1} parent=1 // pred_check
      _
    $region15: #{tpu_custom_call.1} parent=1 // pred_check_branch
      %65 = sbr.rel (0) target = $region17
    $region16: #{tpu_custom_call.1} parent=1 // pred_region
      %s67 = ssub.s32 128, 128
      %68 = vsyncadd [#allocation4], %s67
      %s69 = sshll.u32 [#allocation5], 4
      %s70 = int_to_ptr.vmem [resolvable:$true] %s69
      %75 = dma.vmem_to_hbm [thread:$0]  %s70, 128, %s2, [#allocation4], 64, 64, 4
    $region17: #{tpu_custom_call.1} parent=1 // pred_fallthru
      _
    // Predicated region
    $region18: #{tpu_custom_call.1} parent=1 // pred_check
      _
    $region19: #{tpu_custom_call.1} parent=1 // pred_check_branch
      %77 = sbr.rel (0) target = $region21
    $region20: #{tpu_custom_call.1} parent=1 // pred_region
      %78 = dma.done [#allocation4], 128
    $region21: #{tpu_custom_call.1} parent=1 // pred_fallthru
      _
    %79 = vsyncpa [#allocation3], 1
    %80 = vsyncpa [#allocation4], 1

</llo_original>
